<compile_context>
chip_gen: v6e
topology: v6e:2x2x1
jax: 0.10.0
libtpu: 0.0.40
codegen_flags: <defaults>
</compile_context>

<pallas_src>
import jax
import jax.numpy as jnp
from jax.experimental import pallas as pl
from jax.experimental.pallas import tpu as pltpu

_MIB = 1 << 20
# Keep tiles + resident weights under this: safe within v7x's 64 MiB physical
# VMEM per TensorCore (v5e/v6e have 128 MiB, so also fine).
_VMEM_TILE_BUDGET = 44 * _MIB


def _round_up(x, m):
    return (x + m - 1) // m * m


# ----------------------------------------------------------------------------
# Kernels
# ----------------------------------------------------------------------------
def _epilogue(h, b1_ref, w2_ref, b2_ref, w3_ref, b3_ref, g_ref, beta_ref,
              o_ref):
    """relu(h+b1) @ W2 -> relu -> @ W3 + b3 -> LayerNorm -> store."""
    h = jnp.maximum(h + b1_ref[...], 0.0)                       # f32 VPU
    h = jnp.dot(h.astype(jnp.bfloat16), w2_ref[...],
                preferred_element_type=jnp.float32)
    h = jnp.maximum(h + b2_ref[...], 0.0)
    y = jnp.dot(h.astype(jnp.bfloat16), w3_ref[...],
                preferred_element_type=jnp.float32) + b3_ref[...]
    # torch.nn.LayerNorm semantics: biased variance, eps=1e-5, f32 math.
    mean = jnp.mean(y, axis=-1, keepdims=True)
    var = jnp.mean((y - mean) ** 2, axis=-1, keepdims=True)
    y = (y - mean) * jax.lax.rsqrt(var + 1e-5)
    o_ref[...] = (y * g_ref[...] + beta_ref[...]).astype(o_ref.dtype)


def _fused_kernel(x_ref, w1_ref, b1_ref, w2_ref, b2_ref, w3_ref, b3_ref,
                  g_ref, beta_ref, o_ref):
    """Single-pass path: full proj1 contraction in one MXU call."""
    h = jnp.dot(x_ref[...].astype(jnp.bfloat16), w1_ref[...],
                preferred_element_type=jnp.float32)
    _epilogue(h, b1_ref, w2_ref, b2_ref, w3_ref, b3_ref, g_ref, beta_ref,
              o_ref)


def _ktiled_kernel(x_ref, w1_ref, b1_ref, w2_ref, b2_ref, w3_ref, b3_ref,
                   g_ref, beta_ref, o_ref, acc_ref):
    """K-tiled path: f32 VMEM accumulator over the proj1 contraction."""
    k = pl.program_id(1)

    @pl.when(k == 0)
    def _():
        acc_ref[...] = jnp.zeros_like(acc_ref)

    acc_ref[...] += jnp.dot(x_ref[...].astype(jnp.bfloat16), w1_ref[...],
                            preferred_element_type=jnp.float32)

    @pl.when(k == pl.num_programs(1) - 1)
    def _():
        _epilogue(acc_ref[...], b1_ref, w2_ref, b2_ref, w3_ref, b3_ref,
                  g_ref, beta_ref, o_ref)


# ----------------------------------------------------------------------------
# VMEM accounting & tile selection
# ----------------------------------------------------------------------------
def _vmem_bytes(tm, tk, k_steps, inter, out_dim, x_itemsize, w1_depth,
                out_itemsize):
    # W2, W3 bf16, single-buffered (Buffered(1)).
    resident = (inter * inter + inter * out_dim) * 2
    # (1, N) bias / LN tiles pad to 8 sublanes, f32, single-buffered.
    resident += (2 * inter + 3 * out_dim) * 4 * 8
    if k_steps == 1:
        resident += tk * inter * 2        # W1 resident, Buffered(1)
        w1_stream = 0
        acc = 0
    else:
        w1_stream = w1_depth * tk * inter * 2
        acc = tm * inter * 4
    x_stream = 2 * tm * tk * x_itemsize
    out_stream = 2 * tm * out_dim * out_itemsize
    return resident + w1_stream + x_stream + out_stream + acc


def _choose_tiles(B, K, inter, out_dim, x_itemsize, out_itemsize, block_rows,
                  max_tk=None):
    tm = min(block_rows, _round_up(B, 8))
    # Give v7x megacore >= 2 row tiles when the batch allows it.
    if B > 8 and _round_up(B, tm) // tm == 1:
        tm = _round_up(-(-B // 2), 8)

    Kp = _round_up(K, 128)
    cap = Kp if max_tk is None else min(_round_up(max_tk, 128), Kp)

    # Prefer the single-pass path: fewest grid steps, no accumulator RMW.
    if cap == Kp and _vmem_bytes(tm, Kp, 1, inter, out_dim, x_itemsize, 1,
                                 out_itemsize) <= _VMEM_TILE_BUDGET:
        return tm, Kp, Kp, 1

    # Otherwise: largest 128-multiple divisor of Kp (<= cap) fitting budget.
    nb = Kp // 128
    tk = 128
    for d in range(nb, 0, -1):
        if nb % d == 0:
            cand = d * 128
            if cand <= cap and _vmem_bytes(
                    tm, cand, Kp // cand, inter, out_dim, x_itemsize, 2,
                    out_itemsize) <= _VMEM_TILE_BUDGET:
                tk = cand
                break
    k_steps = Kp // tk
    w1_depth = 2
    if k_steps > 2 and _vmem_bytes(tm, tk, k_steps, inter, out_dim,
                                   x_itemsize, 3,
                                   out_itemsize) <= _VMEM_TILE_BUDGET:
        w1_depth = 3
    return tm, tk, Kp, w1_depth


# ----------------------------------------------------------------------------
# Forward
# ----------------------------------------------------------------------------
def image_proj_forward(img_embeds, params, *, block_rows=256, block_k=None,
                       out_dtype=jnp.float32):
    """ImageProjModel forward.

    img_embeds: (B, window_size, channels).  Returns (B, output_dim).
    Set out_dtype=jnp.bfloat16 to halve output HBM writeback if the consumer
    accepts bf16 (the cast is free on the VPU).
    """
    w1, b1, w2, b2, w3, b3, gamma, beta = params
    B, S, C = img_embeds.shape
    K = S * C
    inter = w1.shape[1]
    out_dim = w3.shape[1]
    assert inter % 128 == 0 and out_dim % 128 == 0, (
        "intermediate_dim / output_dim must be multiples of 128 (lane-dense)")

    x = img_embeds.reshape(B, K)                # dtype kept; bf16 cast in-kernel
    x_itemsize = x.dtype.itemsize
    out_itemsize = jnp.dtype(out_dtype).itemsize

    tm, tk, Kp, w1_depth = _choose_tiles(B, K, inter, out_dim, x_itemsize,
                                         out_itemsize, block_rows,
                                         max_tk=block_k)
    k_steps = Kp // tk

    # W1 is pre-padded along K at init; only pad here if raw weights came in.
    if w1.shape[0] != Kp:
        # TODO(synk): hoist this pad to init time (init_image_proj_params
        # already does it) — per-call padding adds a full HBM pass over W1.
        w1 = jnp.pad(w1, ((0, Kp - w1.shape[0]), (0, 0)))

    Mp = _round_up(B, tm)
    if Mp != B or Kp != K:
        x = jnp.pad(x, ((0, Mp - B), (0, Kp - K)))   # zero K-pad contributes 0

    need = _vmem_bytes(tm, tk, k_steps, inter, out_dim, x_itemsize, w1_depth,
                       out_itemsize)
    vmem_limit = int(min(max(2 * need + 16 * _MIB, 32 * _MIB), 56 * _MIB))

    if k_steps == 1:
        grid = (Mp // tm,)
        const = lambda i: (0, 0)
        x_spec = pl.BlockSpec((tm, Kp), lambda i: (i, 0))
        w1_spec = pl.BlockSpec((Kp, inter), const,
                               pipeline_mode=pl.Buffered(1))     # resident
        out_spec = pl.BlockSpec((tm, out_dim), lambda i: (i, 0))
        scratch = []
        kernel = _fused_kernel
        dims = ("parallel",)
    else:
        grid = (Mp // tm, k_steps)
        const = lambda i, k: (0, 0)
        x_spec = pl.BlockSpec((tm, tk), lambda i, k: (i, k))
        w1_spec = pl.BlockSpec((tk, inter), lambda i, k: (k, 0),
                               pipeline_mode=pl.Buffered(w1_depth))
        out_spec = pl.BlockSpec((tm, out_dim), lambda i, k: (i, 0))
        scratch = [pltpu.VMEM((tm, inter), jnp.float32)]
        kernel = _ktiled_kernel
        dims = ("parallel", "arbitrary")

    in_specs = [
        x_spec,                                                               # x
        w1_spec,                                                              # W1
        pl.BlockSpec((1, inter), const, pipeline_mode=pl.Buffered(1)),        # b1
        pl.BlockSpec((inter, inter), const, pipeline_mode=pl.Buffered(1)),    # W2
        pl.BlockSpec((1, inter), const, pipeline_mode=pl.Buffered(1)),        # b2
        pl.BlockSpec((inter, out_dim), const, pipeline_mode=pl.Buffered(1)),  # W3
        pl.BlockSpec((1, out_dim), const, pipeline_mode=pl.Buffered(1)),      # b3
        pl.BlockSpec((1, out_dim), const, pipeline_mode=pl.Buffered(1)),      # gamma
        pl.BlockSpec((1, out_dim), const, pipeline_mode=pl.Buffered(1)),      # beta
    ]

    out = pl.pallas_call(
        kernel,
        out_shape=jax.ShapeDtypeStruct((Mp, out_dim), out_dtype),
        grid_spec=pltpu.PrefetchScalarGridSpec(
            num_scalar_prefetch=0,
            grid=grid,
            in_specs=in_specs,
            out_specs=out_spec,
            scratch_shapes=scratch,
        ),
        compiler_params=pltpu.CompilerParams(
            dimension_semantics=dims,
            vmem_limit_bytes=vmem_limit),
    )(x, w1, b1, w2, b2, w3, b3, gamma, beta)

    return out[:B]


# ----------------------------------------------------------------------------
# Parameter init (deterministic, torch.nn.Linear-style fan-in uniform).
# Weights stored transposed (in, out), bf16 for the MXU (precision choice:
# matches MXU input rounding, deviates from the f32 torch module); biases and
# LayerNorm params stay f32.  W1's K padding is done ONCE here.
# ----------------------------------------------------------------------------
def linear_params(key, d_in, d_out):
    kw, kb = jax.random.split(key)
    bound = 1.0 / (d_in ** 0.5)
    w = jax.random.uniform(kw, (d_in, d_out), jnp.float32, -bound, bound)
    b = jax.random.uniform(kb, (1, d_out), jnp.float32, -bound, bound)
    return w, b


def init_image_proj_params(key, *, seq_len, channels, intermediate_dim,
                           output_dim):
    k1, k2, k3 = jax.random.split(key, 3)
    d_in = seq_len * channels
    w1, b1 = linear_params(k1, d_in, intermediate_dim)
    w2, b2 = linear_params(k2, intermediate_dim, intermediate_dim)
    w3, b3 = linear_params(k3, intermediate_dim, output_dim)
    gamma = jnp.ones((1, output_dim), jnp.float32)
    beta = jnp.zeros((1, output_dim), jnp.float32)
    d_in_p = _round_up(d_in, 128)
    w1 = jnp.pad(w1, ((0, d_in_p - d_in), (0, 0)))   # one-time K padding
    return (w1.astype(jnp.bfloat16), b1,
            w2.astype(jnp.bfloat16), b2,
            w3.astype(jnp.bfloat16), b3,
            gamma, beta)


# ----------------------------------------------------------------------------
# Pure-jnp reference mirroring kernel numerics (bf16 matmul inputs, f32
# accumulation / epilogue).
# ----------------------------------------------------------------------------
def _ref_forward(img_embeds, params):
    w1, b1, w2, b2, w3, b3, gamma, beta = params
    B, S, C = img_embeds.shape
    K = S * C
    x = img_embeds.reshape(B, K).astype(jnp.bfloat16)
    h = jnp.dot(x, w1[:K], preferred_element_type=jnp.float32) + b1
    h = jnp.maximum(h, 0.0)
    h = jnp.dot(h.astype(jnp.bfloat16), w2,
                preferred_element_type=jnp.float32) + b2
    h = jnp.maximum(h, 0.0)
    y = jnp.dot(h.astype(jnp.bfloat16), w3,
                preferred_element_type=jnp.float32) + b3
    mean = jnp.mean(y, axis=-1, keepdims=True)
    var = jnp.mean((y - mean) ** 2, axis=-1, keepdims=True)
    return (y - mean) * jax.lax.rsqrt(var + 1e-5) * gamma + beta


if __name__ == "__main__":
    # Small shapes consistent with ImageProjModel.forward:
    #   img_embeds: (batch, window_size(=seq_len), channels)
    # Feature dims kept as multiples of 128 (lane-dense stores, full MXU).
    B, SEQ_LEN, CHANNELS = 8, 4, 128       # input_dim = 512
    INTER, OUT_DIM = 256, 256

    key = jax.random.PRNGKey(0)
    k_x, k_p = jax.random.split(key)
    img_embeds = jax.random.normal(k_x, (B, SEQ_LEN, CHANNELS), jnp.float32)
    params = init_image_proj_params(
        k_p, seq_len=SEQ_LEN, channels=CHANNELS,
        intermediate_dim=INTER, output_dim=OUT_DIM)

    ref = _ref_forward(img_embeds, params)

    # Path 1: auto tiling -> single-pass (tk = K), 1-D row grid, no accumulator.
    tokens = image_proj_forward(img_embeds, params)
    tokens = jax.block_until_ready(tokens)
    assert tokens.shape == (B, OUT_DIM)
    assert jnp.allclose(tokens, ref, atol=2e-2, rtol=2e-2), float(
        jnp.max(jnp.abs(tokens - ref)))

    # Path 2: forced K-tiling (block_k=256 -> 2 reduction steps) exercising the
    # accumulator / pl.when init-finalize path.
    tokens_kt = image_proj_forward(img_embeds, params, block_k=256)
    tokens_kt = jax.block_until_ready(tokens_kt)
    assert jnp.allclose(tokens_kt, ref, atol=2e-2, rtol=2e-2), float(
        jnp.max(jnp.abs(tokens_kt - ref)))

    print("KERNEL_OK")
</pallas_src>

<mosaic_0001>
module attributes {stable_mosaic.version = 11 : i64} {
  func.func @_fused_kernel(%arg0: i32, %arg1: memref<8x512xf32, #tpu.memory_space<vmem>>, %arg2: memref<512x256xbf16, #tpu.memory_space<vmem>>, %arg3: memref<1x256xf32, #tpu.memory_space<vmem>>, %arg4: memref<256x256xbf16, #tpu.memory_space<vmem>>, %arg5: memref<1x256xf32, #tpu.memory_space<vmem>>, %arg6: memref<256x256xbf16, #tpu.memory_space<vmem>>, %arg7: memref<1x256xf32, #tpu.memory_space<vmem>>, %arg8: memref<1x256xf32, #tpu.memory_space<vmem>>, %arg9: memref<1x256xf32, #tpu.memory_space<vmem>>, %arg10: memref<8x256xf32, #tpu.memory_space<vmem>>) attributes {dimension_semantics = [#tpu.dimension_semantics<parallel>], iteration_bounds = array<i64: 1>, scalar_prefetch = 0 : i64, scratch_operands = 0 : i64, tpu.core_type = #tpu.core_type<tc>, window_params = [{transform_indices = @transform_0, window_bounds = array<i64: 8, 512>}, {pipeline_mode = #tpu.pipeline_mode<synchronous>, transform_indices = @transform_1, window_bounds = array<i64: 512, 256>}, {pipeline_mode = #tpu.pipeline_mode<synchronous>, transform_indices = @transform_2, window_bounds = array<i64: 1, 256>}, {pipeline_mode = #tpu.pipeline_mode<synchronous>, transform_indices = @transform_3, window_bounds = array<i64: 256, 256>}, {pipeline_mode = #tpu.pipeline_mode<synchronous>, transform_indices = @transform_4, window_bounds = array<i64: 1, 256>}, {pipeline_mode = #tpu.pipeline_mode<synchronous>, transform_indices = @transform_5, window_bounds = array<i64: 256, 256>}, {pipeline_mode = #tpu.pipeline_mode<synchronous>, transform_indices = @transform_6, window_bounds = array<i64: 1, 256>}, {pipeline_mode = #tpu.pipeline_mode<synchronous>, transform_indices = @transform_7, window_bounds = array<i64: 1, 256>}, {pipeline_mode = #tpu.pipeline_mode<synchronous>, transform_indices = @transform_8, window_bounds = array<i64: 1, 256>}, {transform_indices = @transform_9, window_bounds = array<i64: 8, 256>}]} {
    %c0 = arith.constant 0 : index
    %c0_0 = arith.constant 0 : index
    %0 = vector.load %arg1[%c0, %c0_0] : memref<8x512xf32, #tpu.memory_space<vmem>>, vector<8x512xf32>
    %1 = arith.truncf %0 : vector<8x512xf32> to vector<8x512xbf16>
    %c0_1 = arith.constant 0 : index
    %c0_2 = arith.constant 0 : index
    %2 = vector.load %arg2[%c0_1, %c0_2] : memref<512x256xbf16, #tpu.memory_space<vmem>>, vector<512x256xbf16>
    %cst = arith.constant dense<0.000000e+00> : vector<8x256xf32>
    %3 = tpu.matmul %1, %2, %cst {dimension_numbers = #tpu.dot_dimension_numbers<[1], [0], [0], [1], [0, 0, 1, 1], [], []>} : vector<8x512xbf16>, vector<512x256xbf16>, vector<8x256xf32> -> vector<8x256xf32>
    %c0_3 = arith.constant 0 : index
    %c0_4 = arith.constant 0 : index
    %4 = vector.load %arg3[%c0_3, %c0_4] : memref<1x256xf32, #tpu.memory_space<vmem>>, vector<1x256xf32>
    %5 = vector.broadcast %4 : vector<1x256xf32> to vector<8x256xf32>
    %6 = arith.addf %3, %5 : vector<8x256xf32>
    %cst_5 = arith.constant 0.000000e+00 : f32
    %7 = vector.broadcast %cst_5 : f32 to vector<8x256xf32>
    %8 = arith.maximumf %6, %7 : vector<8x256xf32>
    %9 = arith.truncf %8 : vector<8x256xf32> to vector<8x256xbf16>
    %c0_6 = arith.constant 0 : index
    %c0_7 = arith.constant 0 : index
    %10 = vector.load %arg4[%c0_6, %c0_7] : memref<256x256xbf16, #tpu.memory_space<vmem>>, vector<256x256xbf16>
    %cst_8 = arith.constant dense<0.000000e+00> : vector<8x256xf32>
    %11 = tpu.matmul %9, %10, %cst_8 {dimension_numbers = #tpu.dot_dimension_numbers<[1], [0], [0], [1], [0, 0, 1, 1], [], []>} : vector<8x256xbf16>, vector<256x256xbf16>, vector<8x256xf32> -> vector<8x256xf32>
    %c0_9 = arith.constant 0 : index
    %c0_10 = arith.constant 0 : index
    %12 = vector.load %arg5[%c0_9, %c0_10] : memref<1x256xf32, #tpu.memory_space<vmem>>, vector<1x256xf32>
    %13 = vector.broadcast %12 : vector<1x256xf32> to vector<8x256xf32>
    %14 = arith.addf %11, %13 : vector<8x256xf32>
    %cst_11 = arith.constant 0.000000e+00 : f32
    %15 = vector.broadcast %cst_11 : f32 to vector<8x256xf32>
    %16 = arith.maximumf %14, %15 : vector<8x256xf32>
    %17 = arith.truncf %16 : vector<8x256xf32> to vector<8x256xbf16>
    %c0_12 = arith.constant 0 : index
    %c0_13 = arith.constant 0 : index
    %18 = vector.load %arg6[%c0_12, %c0_13] : memref<256x256xbf16, #tpu.memory_space<vmem>>, vector<256x256xbf16>
    %cst_14 = arith.constant dense<0.000000e+00> : vector<8x256xf32>
    %19 = tpu.matmul %17, %18, %cst_14 {dimension_numbers = #tpu.dot_dimension_numbers<[1], [0], [0], [1], [0, 0, 1, 1], [], []>} : vector<8x256xbf16>, vector<256x256xbf16>, vector<8x256xf32> -> vector<8x256xf32>
    %c0_15 = arith.constant 0 : index
    %c0_16 = arith.constant 0 : index
    %20 = vector.load %arg7[%c0_15, %c0_16] : memref<1x256xf32, #tpu.memory_space<vmem>>, vector<1x256xf32>
    %21 = vector.broadcast %20 : vector<1x256xf32> to vector<8x256xf32>
    %22 = arith.addf %19, %21 : vector<8x256xf32>
    %cst_17 = arith.constant dense<0.000000e+00> : vector<8xf32>
    %23 = vector.multi_reduction <add>, %22, %cst_17 [1] : vector<8x256xf32> to vector<8xf32>
    %24 = vector.shape_cast %23 : vector<8xf32> to vector<8x1xf32>
    %cst_18 = arith.constant 2.560000e+02 : f32
    %25 = vector.broadcast %cst_18 : f32 to vector<8x1xf32>
    %26 = arith.divf %24, %25 : vector<8x1xf32>
    %27 = vector.broadcast %26 : vector<8x1xf32> to vector<8x256xf32>
    %28 = arith.subf %22, %27 : vector<8x256xf32>
    %29 = arith.mulf %28, %28 : vector<8x256xf32>
    %cst_19 = arith.constant dense<0.000000e+00> : vector<8xf32>
    %30 = vector.multi_reduction <add>, %29, %cst_19 [1] : vector<8x256xf32> to vector<8xf32>
    %31 = vector.shape_cast %30 : vector<8xf32> to vector<8x1xf32>
    %cst_20 = arith.constant 2.560000e+02 : f32
    %32 = vector.broadcast %cst_20 : f32 to vector<8x1xf32>
    %33 = arith.divf %31, %32 : vector<8x1xf32>
    %34 = vector.broadcast %26 : vector<8x1xf32> to vector<8x256xf32>
    %35 = arith.subf %22, %34 : vector<8x256xf32>
    %cst_21 = arith.constant 9.99999974E-6 : f32
    %36 = vector.broadcast %cst_21 : f32 to vector<8x1xf32>
    %37 = arith.addf %33, %36 : vector<8x1xf32>
    %38 = math.rsqrt %37 : vector<8x1xf32>
    %39 = vector.broadcast %38 : vector<8x1xf32> to vector<8x256xf32>
    %40 = arith.mulf %35, %39 : vector<8x256xf32>
    %c0_22 = arith.constant 0 : index
    %c0_23 = arith.constant 0 : index
    %41 = vector.load %arg8[%c0_22, %c0_23] : memref<1x256xf32, #tpu.memory_space<vmem>>, vector<1x256xf32>
    %42 = vector.broadcast %41 : vector<1x256xf32> to vector<8x256xf32>
    %43 = arith.mulf %40, %42 : vector<8x256xf32>
    %c0_24 = arith.constant 0 : index
    %c0_25 = arith.constant 0 : index
    %44 = vector.load %arg9[%c0_24, %c0_25] : memref<1x256xf32, #tpu.memory_space<vmem>>, vector<1x256xf32>
    %45 = vector.broadcast %44 : vector<1x256xf32> to vector<8x256xf32>
    %46 = arith.addf %43, %45 : vector<8x256xf32>
    %c0_26 = arith.constant 0 : index
    %c0_27 = arith.constant 0 : index
    %47 = vector.load %arg10[%c0_26, %c0_27] : memref<8x256xf32, #tpu.memory_space<vmem>>, vector<8x256xf32>
    tpu.vector_store %arg10[%c0_26, %c0_27], %46 {strides = array<i32>} : memref<8x256xf32, #tpu.memory_space<vmem>>, vector<8x256xf32>,
    return
  }
  func.func @transform_0(%arg0: i32) -> (i32, i32) {
    %c0_i32 = arith.constant 0 : i32
    %c0_i32_0 = arith.constant 0 : i32
    return %arg0, %c0_i32 : i32, i32
  }
  func.func @transform_1(%arg0: i32) -> (i32, i32) {
    %c0_i32 = arith.constant 0 : i32
    %c0_i32_0 = arith.constant 0 : i32
    %c0_i32_1 = arith.constant 0 : i32
    return %c0_i32, %c0_i32_0 : i32, i32
  }
  func.func @transform_2(%arg0: i32) -> (i32, i32) {
    %c0_i32 = arith.constant 0 : i32
    %c0_i32_0 = arith.constant 0 : i32
    %c0_i32_1 = arith.constant 0 : i32
    return %c0_i32, %c0_i32_0 : i32, i32
  }
  func.func @transform_3(%arg0: i32) -> (i32, i32) {
    %c0_i32 = arith.constant 0 : i32
    %c0_i32_0 = arith.constant 0 : i32
    %c0_i32_1 = arith.constant 0 : i32
    return %c0_i32, %c0_i32_0 : i32, i32
  }
  func.func @transform_4(%arg0: i32) -> (i32, i32) {
    %c0_i32 = arith.constant 0 : i32
    %c0_i32_0 = arith.constant 0 : i32
    %c0_i32_1 = arith.constant 0 : i32
    return %c0_i32, %c0_i32_0 : i32, i32
  }
  func.func @transform_5(%arg0: i32) -> (i32, i32) {
    %c0_i32 = arith.constant 0 : i32
    %c0_i32_0 = arith.constant 0 : i32
    %c0_i32_1 = arith.constant 0 : i32
    return %c0_i32, %c0_i32_0 : i32, i32
  }
  func.func @transform_6(%arg0: i32) -> (i32, i32) {
    %c0_i32 = arith.constant 0 : i32
    %c0_i32_0 = arith.constant 0 : i32
    %c0_i32_1 = arith.constant 0 : i32
    return %c0_i32, %c0_i32_0 : i32, i32
  }
  func.func @transform_7(%arg0: i32) -> (i32, i32) {
    %c0_i32 = arith.constant 0 : i32
    %c0_i32_0 = arith.constant 0 : i32
    %c0_i32_1 = arith.constant 0 : i32
    return %c0_i32, %c0_i32_0 : i32, i32
  }
  func.func @transform_8(%arg0: i32) -> (i32, i32) {
    %c0_i32 = arith.constant 0 : i32
    %c0_i32_0 = arith.constant 0 : i32
    %c0_i32_1 = arith.constant 0 : i32
    return %c0_i32, %c0_i32_0 : i32, i32
  }
  func.func @transform_9(%arg0: i32) -> (i32, i32) {
    %c0_i32 = arith.constant 0 : i32
    %c0_i32_0 = arith.constant 0 : i32
    return %arg0, %c0_i32 : i32, i32
  }
}

</mosaic_0001>

<llo_original>
// kernel: tpu_custom_call.1
$region0: #{tpu_custom_call.1}
  #allocation0 [shape = 'u32[]', space=smem, size = 0x4, offset = 0x4, fixed_abs, tag = 'smem constant byte address 0x4 - core index']
  #allocation1 [shape = 'u32[144,128]{1,0:T(1,128)}', space=vmem, size = 0x12000, scoped, tag = 'internal scratch']
  %s0 = inlined_call_operand.hbm [shape: f32[8,512], index: 0, kind: input, shape index: {}]
  %s1 = inlined_call_operand.hbm [shape: bf16[512,256], index: 1, kind: input, shape index: {}]
  %s2 = inlined_call_operand.vmem [shape: f32[1,256], index: 2, kind: input, shape index: {}]
  %s3 = inlined_call_operand.hbm [shape: bf16[256,256], index: 3, kind: input, shape index: {}]
  %s4 = inlined_call_operand.vmem [shape: f32[1,256], index: 4, kind: input, shape index: {}]
  %s5 = inlined_call_operand.hbm [shape: bf16[256,256], index: 5, kind: input, shape index: {}]
  %s6 = inlined_call_operand.vmem [shape: f32[1,256], index: 6, kind: input, shape index: {}]
  %s7 = inlined_call_operand.vmem [shape: f32[1,256], index: 7, kind: input, shape index: {}]
  %s8 = inlined_call_operand.vmem [shape: f32[1,256], index: 8, kind: input, shape index: {}]
  %s9 = inlined_call_operand.hbm [shape: f32[8,256], index: 9, kind: output, shape index: {}]
  %s10 = sld [smem:[#allocation0]]
  $region62: #{tpu_custom_call.1} parent=0
    _
  %s12 = ssub.s32 1, %s10
  %s13 = scalar_select 0, %s12, %s10
  $region1: #{tpu_custom_call.1} parent=0
    #allocation2 [shape = 'u8[16384]{0}', space=vmem, size = 0x4000, scoped, tag = 'input window, operand 0, single buffered']
    #allocation3 [shape = 's32[1]{0}', space=sflag, size = 0x4, scoped, tag = 'scoped memory for tpu_custom_call.1']
    #allocation4 [shape = 's32[1]{0}', space=sflag, size = 0x4, scoped, tag = 'scoped memory for tpu_custom_call.1']
    #allocation5 [shape = 'u8[262144]{0}', space=vmem, size = 0x40000, scoped, tag = 'input window, operand 1, single buffered']
    #allocation6 [shape = 's32[1]{0}', space=sflag, size = 0x4, scoped, tag = 'scoped memory for tpu_custom_call.1']
    #allocation7 [shape = 'u8[131072]{0}', space=vmem, size = 0x20000, scoped, tag = 'input window, operand 3, single buffered']
    #allocation8 [shape = 'u8[131072]{0}', space=vmem, size = 0x20000, scoped, tag = 'input window, operand 5, single buffered']
    #allocation9 [shape = 's32[1]{0}', space=sflag, size = 0x4, scoped, tag = 'scoped memory for tpu_custom_call.1']
    #allocation10 [shape = 'u8[8192]{0}', space=vmem, size = 0x2000, scoped, tag = 'output window, operand 0, single buffered']
    %14 = vsyncpa [#allocation3], 0
    %15 = vsyncpa [#allocation6], 0
    %16 = vsyncpa [#allocation9], 0
    %17 = vsyncpa [#allocation4], 0
    // Predicated region
    $region2: #{tpu_custom_call.1} parent=1 // pred_check
      _
    $region3: #{tpu_custom_call.1} parent=1 // pred_check_branch
      %19 = sbr.rel (0) target = $region5
    $region4: #{tpu_custom_call.1} parent=1 // pred_region
      %s21 = ssub.s32 512, 512
      %22 = vsyncadd [#allocation3], %s21
      %s24 = sshll.u32 [#allocation2], 4
      %s25 = int_to_ptr.vmem [resolvable:$true] %s24
      %27 = dma.hbm_to_vmem [thread:$0]  %s0, 512, %s25, [#allocation3]
    $region5: #{tpu_custom_call.1} parent=1 // pred_fallthru
      _
    // Predicated region
    $region6: #{tpu_custom_call.1} parent=1 // pred_check
      _
    $region7: #{tpu_custom_call.1} parent=1 // pred_check_branch
      %29 = sbr.rel (0) target = $region9
    $region8: #{tpu_custom_call.1} parent=1 // pred_region
      %s31 = ssub.s32 8192, 8192
      %32 = vsyncadd [#allocation6], %s31
      %s33 = sshll.u32 [#allocation5], 4
      %s34 = int_to_ptr.vmem [resolvable:$true] %s33
      %39 = dma.hbm_to_vmem [thread:$0]  %s1, 8192, %s34, [#allocation6], 128, 128, 8
    $region9: #{tpu_custom_call.1} parent=1 // pred_fallthru
      _
    // Predicated region
    $region10: #{tpu_custom_call.1} parent=1 // pred_check
      _
    $region11: #{tpu_custom_call.1} parent=1 // pred_check_branch
      %41 = sbr.rel (0) target = $region13
    $region12: #{tpu_custom_call.1} parent=1 // pred_region
      _
    $region13: #{tpu_custom_call.1} parent=1 // pred_fallthru
      _
    // Predicated region
    $region14: #{tpu_custom_call.1} parent=1 // pred_check
      _
    $region15: #{tpu_custom_call.1} parent=1 // pred_check_branch
      %43 = sbr.rel (0) target = $region17
    $region16: #{tpu_custom_call.1} parent=1 // pred_region
      %s45 = ssub.s32 4096, 4096
      %46 = vsyncadd [#allocation6], %s45
      %s47 = sshll.u32 [#allocation7], 4
      %s48 = int_to_ptr.vmem [resolvable:$true] %s47
      %53 = dma.hbm_to_vmem [thread:$0]  %s3, 4096, %s48, [#allocation6], 128, 128, 8
    $region17: #{tpu_custom_call.1} parent=1 // pred_fallthru
      _
    // Predicated region
    $region18: #{tpu_custom_call.1} parent=1 // pred_check
      _
    $region19: #{tpu_custom_call.1} parent=1 // pred_check_branch
      %55 = sbr.rel (0) target = $region21
    $region20: #{tpu_custom_call.1} parent=1 // pred_region
      _
    $region21: #{tpu_custom_call.1} parent=1 // pred_fallthru
      _
    // Predicated region
    $region22: #{tpu_custom_call.1} parent=1 // pred_check
      _
    $region23: #{tpu_custom_call.1} parent=1 // pred_check_branch
      %57 = sbr.rel (0) target = $region25
    $region24: #{tpu_custom_call.1} parent=1 // pred_region
      %s59 = ssub.s32 4096, 4096
      %60 = vsyncadd [#allocation9], %s59
      %s61 = sshll.u32 [#allocation8], 4
      %s62 = int_to_ptr.vmem [resolvable:$true] %s61
      %67 = dma.hbm_to_vmem [thread:$0]  %s5, 4096, %s62, [#allocation9], 128, 128, 8
    $region25: #{tpu_custom_call.1} parent=1 // pred_fallthru
      _
    // Predicated region
    $region26: #{tpu_custom_call.1} parent=1 // pred_check
      _
    $region27: #{tpu_custom_call.1} parent=1 // pred_check_branch
      %69 = sbr.rel (0) target = $region29
    $region28: #{tpu_custom_call.1} parent=1 // pred_region
      _
    $region29: #{tpu_custom_call.1} parent=1 // pred_fallthru
      _
    // Predicated region
    $region30: #{tpu_custom_call.1} parent=1 // pred_check
      _
    $region31: #{tpu_custom_call.1} parent=1 // pred_check_branch
      %71 = sbr.rel (0) target = $region33
    $region32: #{tpu_custom_call.1} parent=1 // pred_region
      _
    $region33: #{tpu_custom_call.1} parent=1 // pred_fallthru
      _
    // Predicated region
    $region34: #{tpu_custom_call.1} parent=1 // pred_check
      _
    $region35: #{tpu_custom_call.1} parent=1 // pred_check_branch
      %73 = sbr.rel (0) target = $region37
    $region36: #{tpu_custom_call.1} parent=1 // pred_region
      _
    $region37: #{tpu_custom_call.1} parent=1 // pred_fallthru
      _
    // Predicated region
    $region38: #{tpu_custom_call.1} parent=1 // pred_check
      _
    $region39: #{tpu_custom_call.1} parent=1 // pred_check_branch
      %75 = sbr.rel (0) target = $region41
    $region40: #{tpu_custom_call.1} parent=1 // pred_region
      %76 = dma.done [#allocation3], 512
    $region41: #{tpu_custom_call.1} parent=1 // pred_fallthru
      _
    // Predicated region
    $region42: #{tpu_custom_call.1} parent=1 // pred_check
      _
    $region43: #{tpu_custom_call.1} parent=1 // pred_check_branch
      %78 = sbr.rel (0) target = $region45
    $region44: #{tpu_custom_call.1} parent=1 // pred_region
      %79 = dma.done [#allocation6], 8192
    $region45: #{tpu_custom_call.1} parent=1 // pred_fallthru
      _
    // Predicated region
    $region46: #{tpu_custom_call.1} parent=1 // pred_check
      _
    $region47: #{tpu_custom_call.1} parent=1 // pred_check_branch
      %81 = sbr.rel (0) target = $region49
    $region48: #{tpu_custom_call.1} parent=1 // pred_region
      %82 = dma.done [#allocation6], 4096
    $region49: #{tpu_custom_call.1} parent=1 // pred_fallthru
      _
    // Predicated region
    $region50: #{tpu_custom_call.1} parent=1 // pred_check
      _
    $region51: #{tpu_custom_call.1} parent=1 // pred_check_branch
      %84 = sbr.rel (0) target = $region53
    $region52: #{tpu_custom_call.1} parent=1 // pred_region
      %85 = dma.done [#allocation9], 4096
    $region53: #{tpu_custom_call.1} parent=1 // pred_fallthru
      _
    %v86 = vld [vmem:[#allocation2] sm:$0xff]
    %v87 = vld [vmem:[#allocation2 + $0x8] sm:$0xff]
    %v88 = vld [vmem:[#allocation2 + $0x10] sm:$0xff]
    %v89 = vld [vmem:[#allocation2 + $0x18] sm:$0xff]
    %v90 = vpack.c.bf16 %v86, %v86
    %v91 = vpack.c.bf16 %v87, %v87
    %v92 = vpack.c.bf16 %v88, %v88
    %v93 = vpack.c.bf16 %v89, %v89
    %v94 = vld [vmem:[#allocation5] sm:$0xff]
    %v95 = vld [vmem:[#allocation5 + $0x8] sm:$0xff]
    %v96 = vld [vmem:[#allocation5 + $0x10] sm:$0xff]
    %v97 = vld [vmem:[#allocation5 + $0x18] sm:$0xff]
    %v98 = vld [vmem:[#allocation5 + $0x20] sm:$0xff]
    %v99 = vld [vmem:[#allocation5 + $0x28] sm:$0xff]
    %v100 = vld [vmem:[#allocation5 + $0x30] sm:$0xff]
    %v101 = vld [vmem:[#allocation5 + $0x38] sm:$0xff]
    %v102 = vld [vmem:[#allocation5 + $0x40] sm:$0xff]
    %v103 = vld [vmem:[#allocation5 + $0x48] sm:$0xff]
    %v104 = vld [vmem:[#allocation5 + $0x50] sm:$0xff]
    %v105 = vld [vmem:[#allocation5 + $0x58] sm:$0xff]
    %v106 = vld [vmem:[#allocation5 + $0x60] sm:$0xff]
    %v107 = vld [vmem:[#allocation5 + $0x68] sm:$0xff]
    %v108 = vld [vmem:[#allocation5 + $0x70] sm:$0xff]
    %v109 = vld [vmem:[#allocation5 + $0x78] sm:$0xff]
    %v110 = vld [vmem:[#allocation5 + $0x80] sm:$0xff]
    %v111 = vld [vmem:[#allocation5 + $0x88] sm:$0xff]
    %v112 = vld [vmem:[#allocation5 + $0x90] sm:$0xff]
    %v113 = vld [vmem:[#allocation5 + $0x98] sm:$0xff]
    %v114 = vld [vmem:[#allocation5 + $0xa0] sm:$0xff]
    %v115 = vld [vmem:[#allocation5 + $0xa8] sm:$0xff]
    %v116 = vld [vmem:[#allocation5 + $0xb0] sm:$0xff]
    %v117 = vld [vmem:[#allocation5 + $0xb8] sm:$0xff]
    %v118 = vld [vmem:[#allocation5 + $0xc0] sm:$0xff]
    %v119 = vld [vmem:[#allocation5 + $0xc8] sm:$0xff]
    %v120 = vld [vmem:[#allocation5 + $0xd0] sm:$0xff]
    %v121 = vld [vmem:[#allocation5 + $0xd8] sm:$0xff]
    %v122 = vld [vmem:[#allocation5 + $0xe0] sm:$0xff]
    %v123 = vld [vmem:[#allocation5 + $0xe8] sm:$0xff]
    %v124 = vld [vmem:[#allocation5 + $0xf0] sm:$0xff]
    %v125 = vld [vmem:[#allocation5 + $0xf8] sm:$0xff]
    %v126 = vld [vmem:[#allocation5 + $0x100] sm:$0xff]
    %v127 = vld [vmem:[#allocation5 + $0x108] sm:$0xff]
    %v128 = vld [vmem:[#allocation5 + $0x110] sm:$0xff]
    %v129 = vld [vmem:[#allocation5 + $0x118] sm:$0xff]
    %v130 = vld [vmem:[#allocation5 + $0x120] sm:$0xff]
    %v131 = vld [vmem:[#allocation5 + $0x128] sm:$0xff]
    %v132 = vld [vmem:[#allocation5 + $0x130] sm:$0xff]
    %v133 = vld [vmem:[#allocation5 + $0x138] sm:$0xff]
    %v134 = vld [vmem:[#allocation5 + $0x140] sm:$0xff]
    %v135 = vld [vmem:[#allocation5 + $0x148] sm:$0xff]
    %v136 = vld [vmem:[#allocation5 + $0x150] sm:$0xff]
    %v137 = vld [vmem:[#allocation5 + $0x158] sm:$0xff]
    %v138 = vld [vmem:[#allocation5 + $0x160] sm:$0xff]
    %v139 = vld [vmem:[#allocation5 + $0x168] sm:$0xff]
    %v140 = vld [vmem:[#allocation5 + $0x170] sm:$0xff]
    %v141 = vld [vmem:[#allocation5 + $0x178] sm:$0xff]
    %v142 = vld [vmem:[#allocation5 + $0x180] sm:$0xff]
    %v143 = vld [vmem:[#allocation5 + $0x188] sm:$0xff]
    %v144 = vld [vmem:[#allocation5 + $0x190] sm:$0xff]
    %v145 = vld [vmem:[#allocation5 + $0x198] sm:$0xff]
    %v146 = vld [vmem:[#allocation5 + $0x1a0] sm:$0xff]
    %v147 = vld [vmem:[#allocation5 + $0x1a8] sm:$0xff]
    %v148 = vld [vmem:[#allocation5 + $0x1b0] sm:$0xff]
    %v149 = vld [vmem:[#allocation5 + $0x1b8] sm:$0xff]
    %v150 = vld [vmem:[#allocation5 + $0x1c0] sm:$0xff]
    %v151 = vld [vmem:[#allocation5 + $0x1c8] sm:$0xff]
    %v152 = vld [vmem:[#allocation5 + $0x1d0] sm:$0xff]
    %v153 = vld [vmem:[#allocation5 + $0x1d8] sm:$0xff]
    %v154 = vld [vmem:[#allocation5 + $0x1e0] sm:$0xff]
    %v155 = vld [vmem:[#allocation5 + $0x1e8] sm:$0xff]
    %v156 = vld [vmem:[#allocation5 + $0x1f0] sm:$0xff]
    %v157 = vld [vmem:[#allocation5 + $0x1f8] sm:$0xff]
    %v158 = vld [vmem:[%s2] sm:$0x3]
    %v160 = vlaneseq
    %v161 = vshrl.u32 %v160, 7
    %v162 = vsub.s32 0, %v161
    %v163 = vrot.slane %v158, %v162
    %v164 = vlaneseq
    %v165 = vshrl.u32 %v164, 7
    %v166 = vsub.s32 1, %v165
    %v167 = vrot.slane %v158, %v166
    %v234 = vunpack.c.l.b16 %v94
    %v235 = vunpack.c.h.b16 %v94
    %v236 = vunpack.c.l.b16 %v95
    %v237 = vunpack.c.h.b16 %v95
    %v238 = vunpack.c.l.b16 %v96
    %v239 = vunpack.c.h.b16 %v96
    %v240 = vunpack.c.l.b16 %v97
    %v241 = vunpack.c.h.b16 %v97
    %v242 = vunpack.c.l.b16 %v98
    %v243 = vunpack.c.h.b16 %v98
    %v244 = vunpack.c.l.b16 %v99
    %v245 = vunpack.c.h.b16 %v99
    %v246 = vunpack.c.l.b16 %v100
    %v247 = vunpack.c.h.b16 %v100
    %v248 = vunpack.c.l.b16 %v101
    %v249 = vunpack.c.h.b16 %v101
    %v250 = vunpack.c.l.b16 %v102
    %v251 = vunpack.c.h.b16 %v102
    %v252 = vunpack.c.l.b16 %v103
    %v253 = vunpack.c.h.b16 %v103
    %v254 = vunpack.c.l.b16 %v104
    %v255 = vunpack.c.h.b16 %v104
    %v256 = vunpack.c.l.b16 %v105
    %v257 = vunpack.c.h.b16 %v105
    %v258 = vunpack.c.l.b16 %v106
    %v259 = vunpack.c.h.b16 %v106
    %v260 = vunpack.c.l.b16 %v107
    %v261 = vunpack.c.h.b16 %v107
    %v262 = vunpack.c.l.b16 %v108
    %v263 = vunpack.c.h.b16 %v108
    %v264 = vunpack.c.l.b16 %v109
    %v265 = vunpack.c.h.b16 %v109
    %v266 = vunpack.c.l.b16 %v110
    %v267 = vunpack.c.h.b16 %v110
    %v268 = vunpack.c.l.b16 %v111
    %v269 = vunpack.c.h.b16 %v111
    %v270 = vunpack.c.l.b16 %v112
    %v271 = vunpack.c.h.b16 %v112
    %v272 = vunpack.c.l.b16 %v113
    %v273 = vunpack.c.h.b16 %v113
    %v274 = vunpack.c.l.b16 %v114
    %v275 = vunpack.c.h.b16 %v114
    %v276 = vunpack.c.l.b16 %v115
    %v277 = vunpack.c.h.b16 %v115
    %v278 = vunpack.c.l.b16 %v116
    %v279 = vunpack.c.h.b16 %v116
    %v280 = vunpack.c.l.b16 %v117
    %v281 = vunpack.c.h.b16 %v117
    %v282 = vunpack.c.l.b16 %v118
    %v283 = vunpack.c.h.b16 %v118
    %v284 = vunpack.c.l.b16 %v119
    %v285 = vunpack.c.h.b16 %v119
    %v286 = vunpack.c.l.b16 %v120
    %v287 = vunpack.c.h.b16 %v120
    %v288 = vunpack.c.l.b16 %v121
    %v289 = vunpack.c.h.b16 %v121
    %v290 = vunpack.c.l.b16 %v122
    %v291 = vunpack.c.h.b16 %v122
    %v292 = vunpack.c.l.b16 %v123
    %v293 = vunpack.c.h.b16 %v123
    %v294 = vunpack.c.l.b16 %v124
    %v295 = vunpack.c.h.b16 %v124
    %v296 = vunpack.c.l.b16 %v125
    %v297 = vunpack.c.h.b16 %v125
    %v298 = vunpack.c.l.b16 %v126
    %v299 = vunpack.c.h.b16 %v126
    %v300 = vunpack.c.l.b16 %v127
    %v301 = vunpack.c.h.b16 %v127
    %v302 = vunpack.c.l.b16 %v128
    %v303 = vunpack.c.h.b16 %v128
    %v304 = vunpack.c.l.b16 %v129
    %v305 = vunpack.c.h.b16 %v129
    %v306 = vunpack.c.l.b16 %v130
    %v307 = vunpack.c.h.b16 %v130
    %v308 = vunpack.c.l.b16 %v131
    %v309 = vunpack.c.h.b16 %v131
    %v310 = vunpack.c.l.b16 %v132
    %v311 = vunpack.c.h.b16 %v132
    %v312 = vunpack.c.l.b16 %v133
    %v313 = vunpack.c.h.b16 %v133
    %v314 = vunpack.c.l.b16 %v134
    %v315 = vunpack.c.h.b16 %v134
    %v316 = vunpack.c.l.b16 %v135
    %v317 = vunpack.c.h.b16 %v135
    %v318 = vunpack.c.l.b16 %v136
    %v319 = vunpack.c.h.b16 %v136
    %v320 = vunpack.c.l.b16 %v137
    %v321 = vunpack.c.h.b16 %v137
    %v322 = vunpack.c.l.b16 %v138
    %v323 = vunpack.c.h.b16 %v138
    %v324 = vunpack.c.l.b16 %v139
    %v325 = vunpack.c.h.b16 %v139
    %v326 = vunpack.c.l.b16 %v140
    %v327 = vunpack.c.h.b16 %v140
    %v328 = vunpack.c.l.b16 %v141
    %v329 = vunpack.c.h.b16 %v141
    %v330 = vunpack.c.l.b16 %v142
    %v331 = vunpack.c.h.b16 %v142
    %v332 = vunpack.c.l.b16 %v143
    %v333 = vunpack.c.h.b16 %v143
    %v334 = vunpack.c.l.b16 %v144
    %v335 = vunpack.c.h.b16 %v144
    %v336 = vunpack.c.l.b16 %v145
    %v337 = vunpack.c.h.b16 %v145
    %v338 = vunpack.c.l.b16 %v146
    %v339 = vunpack.c.h.b16 %v146
    %v340 = vunpack.c.l.b16 %v147
    %v341 = vunpack.c.h.b16 %v147
    %v342 = vunpack.c.l.b16 %v148
    %v343 = vunpack.c.h.b16 %v148
    %v344 = vunpack.c.l.b16 %v149
    %v345 = vunpack.c.h.b16 %v149
    %v346 = vunpack.c.l.b16 %v150
    %v347 = vunpack.c.h.b16 %v150
    %v348 = vunpack.c.l.b16 %v151
    %v349 = vunpack.c.h.b16 %v151
    %v350 = vunpack.c.l.b16 %v152
    %v351 = vunpack.c.h.b16 %v152
    %v352 = vunpack.c.l.b16 %v153
    %v353 = vunpack.c.h.b16 %v153
    %v354 = vunpack.c.l.b16 %v154
    %v355 = vunpack.c.h.b16 %v154
    %v356 = vunpack.c.l.b16 %v155
    %v357 = vunpack.c.h.b16 %v155
    %v358 = vunpack.c.l.b16 %v156
    %v359 = vunpack.c.h.b16 %v156
    %v360 = vunpack.c.l.b16 %v157
    %v361 = vunpack.c.h.b16 %v157
    %v362 = vpack.c.b16 %v236, %v234
    %v363 = vpack.c.b16 %v237, %v235
    %v364 = vpack.c.b16 %v240, %v238
    %v365 = vpack.c.b16 %v241, %v239
    %v366 = vpack.c.b16 %v244, %v242
    %v367 = vpack.c.b16 %v245, %v243
    %v368 = vpack.c.b16 %v248, %v246
    %v369 = vpack.c.b16 %v249, %v247
    %v370 = vpack.c.b16 %v252, %v250
    %v371 = vpack.c.b16 %v253, %v251
    %v372 = vpack.c.b16 %v256, %v254
    %v373 = vpack.c.b16 %v257, %v255
    %v374 = vpack.c.b16 %v260, %v258
    %v375 = vpack.c.b16 %v261, %v259
    %v376 = vpack.c.b16 %v264, %v262
    %v377 = vpack.c.b16 %v265, %v263
    %v378 = vpack.c.b16 %v268, %v266
    %v379 = vpack.c.b16 %v269, %v267
    %v380 = vpack.c.b16 %v272, %v270
    %v381 = vpack.c.b16 %v273, %v271
    %v382 = vpack.c.b16 %v276, %v274
    %v383 = vpack.c.b16 %v277, %v275
    %v384 = vpack.c.b16 %v280, %v278
    %v385 = vpack.c.b16 %v281, %v279
    %v386 = vpack.c.b16 %v284, %v282
    %v387 = vpack.c.b16 %v285, %v283
    %v388 = vpack.c.b16 %v288, %v286
    %v389 = vpack.c.b16 %v289, %v287
    %v390 = vpack.c.b16 %v292, %v290
    %v391 = vpack.c.b16 %v293, %v291
    %v392 = vpack.c.b16 %v296, %v294
    %v393 = vpack.c.b16 %v297, %v295
    %v394 = vpack.c.b16 %v300, %v298
    %v395 = vpack.c.b16 %v301, %v299
    %v396 = vpack.c.b16 %v304, %v302
    %v397 = vpack.c.b16 %v305, %v303
    %v398 = vpack.c.b16 %v308, %v306
    %v399 = vpack.c.b16 %v309, %v307
    %v400 = vpack.c.b16 %v312, %v310
    %v401 = vpack.c.b16 %v313, %v311
    %v402 = vpack.c.b16 %v316, %v314
    %v403 = vpack.c.b16 %v317, %v315
    %v404 = vpack.c.b16 %v320, %v318
    %v405 = vpack.c.b16 %v321, %v319
    %v406 = vpack.c.b16 %v324, %v322
    %v407 = vpack.c.b16 %v325, %v323
    %v408 = vpack.c.b16 %v328, %v326
    %v409 = vpack.c.b16 %v329, %v327
    %v410 = vpack.c.b16 %v332, %v330
    %v411 = vpack.c.b16 %v333, %v331
    %v412 = vpack.c.b16 %v336, %v334
    %v413 = vpack.c.b16 %v337, %v335
    %v414 = vpack.c.b16 %v340, %v338
    %v415 = vpack.c.b16 %v341, %v339
    %v416 = vpack.c.b16 %v344, %v342
    %v417 = vpack.c.b16 %v345, %v343
    %v418 = vpack.c.b16 %v348, %v346
    %v419 = vpack.c.b16 %v349, %v347
    %v420 = vpack.c.b16 %v352, %v350
    %v421 = vpack.c.b16 %v353, %v351
    %v422 = vpack.c.b16 %v356, %v354
    %v423 = vpack.c.b16 %v357, %v355
    %v424 = vpack.c.b16 %v360, %v358
    %v425 = vpack.c.b16 %v361, %v359
    %490 = vmatprep.subr.bf16.mxu0 %v377
    %491 = vmatpush1.bf16.msra.mxu0 %v376
    %492 = vmatprep.subr.bf16.mxu0 %v375
    %493 = vmatpush1.bf16.msra.mxu0 %v374
    %494 = vmatprep.subr.bf16.mxu0 %v373
    %495 = vmatpush1.bf16.msra.mxu0 %v372
    %496 = vmatprep.subr.bf16.mxu0 %v371
    %497 = vmatpush1.bf16.msra.mxu0 %v370
    %498 = vmatprep.subr.bf16.mxu0 %v369
    %499 = vmatpush1.bf16.msra.mxu0 %v368
    %500 = vmatprep.subr.bf16.mxu0 %v367
    %501 = vmatpush1.bf16.msra.mxu0 %v366
    %502 = vmatprep.subr.bf16.mxu0 %v365
    %503 = vmatpush1.bf16.msra.mxu0 %v364
    %504 = vmatprep.subr.bf16.mxu0 %v363
    %505 = vmatpush1.bf16.msra.mxu0 %v362
    %506 = vmatprep.subr.bf16.mxu0 %v393
    %507 = vmatpush2.bf16.msra.mxu0 %v392
    %508 = vmatprep.subr.bf16.mxu0 %v391
    %509 = vmatpush2.bf16.msra.mxu0 %v390
    %510 = vmatprep.subr.bf16.mxu0 %v389
    %511 = vmatpush2.bf16.msra.mxu0 %v388
    %512 = vmatprep.subr.bf16.mxu0 %v387
    %513 = vmatpush2.bf16.msra.mxu0 %v386
    %514 = vmatprep.subr.bf16.mxu0 %v385
    %515 = vmatpush2.bf16.msra.mxu0 %v384
    %516 = vmatprep.subr.bf16.mxu0 %v383
    %517 = vmatpush2.bf16.msra.mxu0 %v382
    %518 = vmatprep.subr.bf16.mxu0 %v381
    %519 = vmatpush2.bf16.msra.mxu0 %v380
    %520 = vmatprep.subr.bf16.mxu0 %v379
    %521 = vmatpush2.bf16.msra.mxu0 %v378
    %522 = vmatprep.mubr.bf16.mxu0 %v91
    %523 = vmatmul.mubr.bf16.gmra.mxu0 %v90
    %v524 = vpop.f32.mrf.mxu0
    %v525 = vadd.f32 %v163, %v524
    %v526 = vpop.f32.mrf.mxu0
    %v527 = vadd.f32 %v167, %v526
    %v528 = vpop.f32.mrf.mxu0
    %v529 = vpop.f32.mrf.mxu0
    %530 = vdwg.mxu0
    %531 = vmatprep.subr.bf16.mxu0 %v409
    %532 = vmatpush1.bf16.msra.mxu0 %v408
    %533 = vmatprep.subr.bf16.mxu0 %v407
    %534 = vmatpush1.bf16.msra.mxu0 %v406
    %535 = vmatprep.subr.bf16.mxu0 %v405
    %536 = vmatpush1.bf16.msra.mxu0 %v404
    %537 = vmatprep.subr.bf16.mxu0 %v403
    %538 = vmatpush1.bf16.msra.mxu0 %v402
    %539 = vmatprep.subr.bf16.mxu0 %v401
    %540 = vmatpush1.bf16.msra.mxu0 %v400
    %541 = vmatprep.subr.bf16.mxu0 %v399
    %542 = vmatpush1.bf16.msra.mxu0 %v398
    %543 = vmatprep.subr.bf16.mxu0 %v397
    %544 = vmatpush1.bf16.msra.mxu0 %v396
    %545 = vmatprep.subr.bf16.mxu0 %v395
    %546 = vmatpush1.bf16.msra.mxu0 %v394
    %547 = vmatprep.subr.bf16.mxu0 %v425
    %548 = vmatpush2.bf16.msra.mxu0 %v424
    %549 = vmatprep.subr.bf16.mxu0 %v423
    %550 = vmatpush2.bf16.msra.mxu0 %v422
    %551 = vmatprep.subr.bf16.mxu0 %v421
    %552 = vmatpush2.bf16.msra.mxu0 %v420
    %553 = vmatprep.subr.bf16.mxu0 %v419
    %554 = vmatpush2.bf16.msra.mxu0 %v418
    %555 = vmatprep.subr.bf16.mxu0 %v417
    %556 = vmatpush2.bf16.msra.mxu0 %v416
    %557 = vmatprep.subr.bf16.mxu0 %v415
    %558 = vmatpush2.bf16.msra.mxu0 %v414
    %559 = vmatprep.subr.bf16.mxu0 %v413
    %560 = vmatpush2.bf16.msra.mxu0 %v412
    %561 = vmatprep.subr.bf16.mxu0 %v411
    %562 = vmatpush2.bf16.msra.mxu0 %v410
    %563 = vmatprep.mubr.bf16.mxu0 %v93
    %564 = vmatmul.mubr.bf16.gmra.mxu0 %v92
    %v565 = vpop.f32.mrf.mxu0
    %v566 = vadd.f32 %v525, %v565
    %v567 = vpop.f32.mrf.mxu0
    %v568 = vadd.f32 %v527, %v567
    %v569 = vpop.f32.mrf.mxu0
    %v570 = vpop.f32.mrf.mxu0
    %571 = vdwg.mxu0
    %v572 = vmax.f32 %v566, 0.0
    %v573 = vmax.f32 %v568, 0.0
    %v574 = vpack.c.bf16 %v572, %v572
    %v575 = vpack.c.bf16 %v573, %v573
    %v576 = vld [vmem:[#allocation7] sm:$0xff]
    %v577 = vld [vmem:[#allocation7 + $0x8] sm:$0xff]
    %v578 = vld [vmem:[#allocation7 + $0x10] sm:$0xff]
    %v579 = vld [vmem:[#allocation7 + $0x18] sm:$0xff]
    %v580 = vld [vmem:[#allocation7 + $0x20] sm:$0xff]
    %v581 = vld [vmem:[#allocation7 + $0x28] sm:$0xff]
    %v582 = vld [vmem:[#allocation7 + $0x30] sm:$0xff]
    %v583 = vld [vmem:[#allocation7 + $0x38] sm:$0xff]
    %v584 = vld [vmem:[#allocation7 + $0x40] sm:$0xff]
    %v585 = vld [vmem:[#allocation7 + $0x48] sm:$0xff]
    %v586 = vld [vmem:[#allocation7 + $0x50] sm:$0xff]
    %v587 = vld [vmem:[#allocation7 + $0x58] sm:$0xff]
    %v588 = vld [vmem:[#allocation7 + $0x60] sm:$0xff]
    %v589 = vld [vmem:[#allocation7 + $0x68] sm:$0xff]
    %v590 = vld [vmem:[#allocation7 + $0x70] sm:$0xff]
    %v591 = vld [vmem:[#allocation7 + $0x78] sm:$0xff]
    %v592 = vld [vmem:[#allocation7 + $0x80] sm:$0xff]
    %v593 = vld [vmem:[#allocation7 + $0x88] sm:$0xff]
    %v594 = vld [vmem:[#allocation7 + $0x90] sm:$0xff]
    %v595 = vld [vmem:[#allocation7 + $0x98] sm:$0xff]
    %v596 = vld [vmem:[#allocation7 + $0xa0] sm:$0xff]
    %v597 = vld [vmem:[#allocation7 + $0xa8] sm:$0xff]
    %v598 = vld [vmem:[#allocation7 + $0xb0] sm:$0xff]
    %v599 = vld [vmem:[#allocation7 + $0xb8] sm:$0xff]
    %v600 = vld [vmem:[#allocation7 + $0xc0] sm:$0xff]
    %v601 = vld [vmem:[#allocation7 + $0xc8] sm:$0xff]
    %v602 = vld [vmem:[#allocation7 + $0xd0] sm:$0xff]
    %v603 = vld [vmem:[#allocation7 + $0xd8] sm:$0xff]
    %v604 = vld [vmem:[#allocation7 + $0xe0] sm:$0xff]
    %v605 = vld [vmem:[#allocation7 + $0xe8] sm:$0xff]
    %v606 = vld [vmem:[#allocation7 + $0xf0] sm:$0xff]
    %v607 = vld [vmem:[#allocation7 + $0xf8] sm:$0xff]
    %v608 = vld [vmem:[%s4] sm:$0x3]
    %v610 = vlaneseq
    %v611 = vshrl.u32 %v610, 7
    %v612 = vsub.s32 0, %v611
    %v613 = vrot.slane %v608, %v612
    %v614 = vlaneseq
    %v615 = vshrl.u32 %v614, 7
    %v616 = vsub.s32 1, %v615
    %v617 = vrot.slane %v608, %v616
    %v652 = vunpack.c.l.b16 %v576
    %v653 = vunpack.c.h.b16 %v576
    %v654 = vunpack.c.l.b16 %v577
    %v655 = vunpack.c.h.b16 %v577
    %v656 = vunpack.c.l.b16 %v578
    %v657 = vunpack.c.h.b16 %v578
    %v658 = vunpack.c.l.b16 %v579
    %v659 = vunpack.c.h.b16 %v579
    %v660 = vunpack.c.l.b16 %v580
    %v661 = vunpack.c.h.b16 %v580
    %v662 = vunpack.c.l.b16 %v581
    %v663 = vunpack.c.h.b16 %v581
    %v664 = vunpack.c.l.b16 %v582
    %v665 = vunpack.c.h.b16 %v582
    %v666 = vunpack.c.l.b16 %v583
    %v667 = vunpack.c.h.b16 %v583
    %v668 = vunpack.c.l.b16 %v584
    %v669 = vunpack.c.h.b16 %v584
    %v670 = vunpack.c.l.b16 %v585
    %v671 = vunpack.c.h.b16 %v585
    %v672 = vunpack.c.l.b16 %v586
    %v673 = vunpack.c.h.b16 %v586
    %v674 = vunpack.c.l.b16 %v587
    %v675 = vunpack.c.h.b16 %v587
    %v676 = vunpack.c.l.b16 %v588
    %v677 = vunpack.c.h.b16 %v588
    %v678 = vunpack.c.l.b16 %v589
    %v679 = vunpack.c.h.b16 %v589
    %v680 = vunpack.c.l.b16 %v590
    %v681 = vunpack.c.h.b16 %v590
    %v682 = vunpack.c.l.b16 %v591
    %v683 = vunpack.c.h.b16 %v591
    %v684 = vunpack.c.l.b16 %v592
    %v685 = vunpack.c.h.b16 %v592
    %v686 = vunpack.c.l.b16 %v593
    %v687 = vunpack.c.h.b16 %v593
    %v688 = vunpack.c.l.b16 %v594
    %v689 = vunpack.c.h.b16 %v594
    %v690 = vunpack.c.l.b16 %v595
    %v691 = vunpack.c.h.b16 %v595
    %v692 = vunpack.c.l.b16 %v596
    %v693 = vunpack.c.h.b16 %v596
    %v694 = vunpack.c.l.b16 %v597
    %v695 = vunpack.c.h.b16 %v597
    %v696 = vunpack.c.l.b16 %v598
    %v697 = vunpack.c.h.b16 %v598
    %v698 = vunpack.c.l.b16 %v599
    %v699 = vunpack.c.h.b16 %v599
    %v700 = vunpack.c.l.b16 %v600
    %v701 = vunpack.c.h.b16 %v600
    %v702 = vunpack.c.l.b16 %v601
    %v703 = vunpack.c.h.b16 %v601
    %v704 = vunpack.c.l.b16 %v602
    %v705 = vunpack.c.h.b16 %v602
    %v706 = vunpack.c.l.b16 %v603
    %v707 = vunpack.c.h.b16 %v603
    %v708 = vunpack.c.l.b16 %v604
    %v709 = vunpack.c.h.b16 %v604
    %v710 = vunpack.c.l.b16 %v605
    %v711 = vunpack.c.h.b16 %v605
    %v712 = vunpack.c.l.b16 %v606
    %v713 = vunpack.c.h.b16 %v606
    %v714 = vunpack.c.l.b16 %v607
    %v715 = vunpack.c.h.b16 %v607
    %v716 = vpack.c.b16 %v654, %v652
    %v717 = vpack.c.b16 %v655, %v653
    %v718 = vpack.c.b16 %v658, %v656
    %v719 = vpack.c.b16 %v659, %v657
    %v720 = vpack.c.b16 %v662, %v660
    %v721 = vpack.c.b16 %v663, %v661
    %v722 = vpack.c.b16 %v666, %v664
    %v723 = vpack.c.b16 %v667, %v665
    %v724 = vpack.c.b16 %v670, %v668
    %v725 = vpack.c.b16 %v671, %v669
    %v726 = vpack.c.b16 %v674, %v672
    %v727 = vpack.c.b16 %v675, %v673
    %v728 = vpack.c.b16 %v678, %v676
    %v729 = vpack.c.b16 %v679, %v677
    %v730 = vpack.c.b16 %v682, %v680
    %v731 = vpack.c.b16 %v683, %v681
    %v732 = vpack.c.b16 %v686, %v684
    %v733 = vpack.c.b16 %v687, %v685
    %v734 = vpack.c.b16 %v690, %v688
    %v735 = vpack.c.b16 %v691, %v689
    %v736 = vpack.c.b16 %v694, %v692
    %v737 = vpack.c.b16 %v695, %v693
    %v738 = vpack.c.b16 %v698, %v696
    %v739 = vpack.c.b16 %v699, %v697
    %v740 = vpack.c.b16 %v702, %v700
    %v741 = vpack.c.b16 %v703, %v701
    %v742 = vpack.c.b16 %v706, %v704
    %v743 = vpack.c.b16 %v707, %v705
    %v744 = vpack.c.b16 %v710, %v708
    %v745 = vpack.c.b16 %v711, %v709
    %v746 = vpack.c.b16 %v714, %v712
    %v747 = vpack.c.b16 %v715, %v713
    %780 = vmatprep.subr.bf16.mxu0 %v731
    %781 = vmatpush1.bf16.msra.mxu0 %v730
    %782 = vmatprep.subr.bf16.mxu0 %v729
    %783 = vmatpush1.bf16.msra.mxu0 %v728
    %784 = vmatprep.subr.bf16.mxu0 %v727
    %785 = vmatpush1.bf16.msra.mxu0 %v726
    %786 = vmatprep.subr.bf16.mxu0 %v725
    %787 = vmatpush1.bf16.msra.mxu0 %v724
    %788 = vmatprep.subr.bf16.mxu0 %v723
    %789 = vmatpush1.bf16.msra.mxu0 %v722
    %790 = vmatprep.subr.bf16.mxu0 %v721
    %791 = vmatpush1.bf16.msra.mxu0 %v720
    %792 = vmatprep.subr.bf16.mxu0 %v719
    %793 = vmatpush1.bf16.msra.mxu0 %v718
    %794 = vmatprep.subr.bf16.mxu0 %v717
    %795 = vmatpush1.bf16.msra.mxu0 %v716
    %796 = vmatprep.subr.bf16.mxu0 %v747
    %797 = vmatpush2.bf16.msra.mxu0 %v746
    %798 = vmatprep.subr.bf16.mxu0 %v745
    %799 = vmatpush2.bf16.msra.mxu0 %v744
    %800 = vmatprep.subr.bf16.mxu0 %v743
    %801 = vmatpush2.bf16.msra.mxu0 %v742
    %802 = vmatprep.subr.bf16.mxu0 %v741
    %803 = vmatpush2.bf16.msra.mxu0 %v740
    %804 = vmatprep.subr.bf16.mxu0 %v739
    %805 = vmatpush2.bf16.msra.mxu0 %v738
    %806 = vmatprep.subr.bf16.mxu0 %v737
    %807 = vmatpush2.bf16.msra.mxu0 %v736
    %808 = vmatprep.subr.bf16.mxu0 %v735
    %809 = vmatpush2.bf16.msra.mxu0 %v734
    %810 = vmatprep.subr.bf16.mxu0 %v733
    %811 = vmatpush2.bf16.msra.mxu0 %v732
    %812 = vmatprep.mubr.bf16.mxu0 %v575
    %813 = vmatmul.mubr.bf16.gmra.mxu0 %v574
    %v814 = vpop.f32.mrf.mxu0
    %v815 = vadd.f32 %v613, %v814
    %v816 = vpop.f32.mrf.mxu0
    %v817 = vadd.f32 %v617, %v816
    %v818 = vpop.f32.mrf.mxu0
    %v819 = vpop.f32.mrf.mxu0
    %820 = vdwg.mxu0
    %v821 = vmax.f32 %v815, 0.0
    %v822 = vmax.f32 %v817, 0.0
    %v823 = vpack.c.bf16 %v821, %v821
    %v824 = vpack.c.bf16 %v822, %v822
    %v825 = vld [vmem:[#allocation8] sm:$0xff]
    %v826 = vld [vmem:[#allocation8 + $0x8] sm:$0xff]
    %v827 = vld [vmem:[#allocation8 + $0x10] sm:$0xff]
    %v828 = vld [vmem:[#allocation8 + $0x18] sm:$0xff]
    %v829 = vld [vmem:[#allocation8 + $0x20] sm:$0xff]
    %v830 = vld [vmem:[#allocation8 + $0x28] sm:$0xff]
    %v831 = vld [vmem:[#allocation8 + $0x30] sm:$0xff]
    %v832 = vld [vmem:[#allocation8 + $0x38] sm:$0xff]
    %v833 = vld [vmem:[#allocation8 + $0x40] sm:$0xff]
    %v834 = vld [vmem:[#allocation8 + $0x48] sm:$0xff]
    %v835 = vld [vmem:[#allocation8 + $0x50] sm:$0xff]
    %v836 = vld [vmem:[#allocation8 + $0x58] sm:$0xff]
    %v837 = vld [vmem:[#allocation8 + $0x60] sm:$0xff]
    %v838 = vld [vmem:[#allocation8 + $0x68] sm:$0xff]
    %v839 = vld [vmem:[#allocation8 + $0x70] sm:$0xff]
    %v840 = vld [vmem:[#allocation8 + $0x78] sm:$0xff]
    %v841 = vld [vmem:[#allocation8 + $0x80] sm:$0xff]
    %v842 = vld [vmem:[#allocation8 + $0x88] sm:$0xff]
    %v843 = vld [vmem:[#allocation8 + $0x90] sm:$0xff]
    %v844 = vld [vmem:[#allocation8 + $0x98] sm:$0xff]
    %v845 = vld [vmem:[#allocation8 + $0xa0] sm:$0xff]
    %v846 = vld [vmem:[#allocation8 + $0xa8] sm:$0xff]
    %v847 = vld [vmem:[#allocation8 + $0xb0] sm:$0xff]
    %v848 = vld [vmem:[#allocation8 + $0xb8] sm:$0xff]
    %v849 = vld [vmem:[#allocation8 + $0xc0] sm:$0xff]
    %v850 = vld [vmem:[#allocation8 + $0xc8] sm:$0xff]
    %v851 = vld [vmem:[#allocation8 + $0xd0] sm:$0xff]
    %v852 = vld [vmem:[#allocation8 + $0xd8] sm:$0xff]
    %v853 = vld [vmem:[#allocation8 + $0xe0] sm:$0xff]
    %v854 = vld [vmem:[#allocation8 + $0xe8] sm:$0xff]
    %v855 = vld [vmem:[#allocation8 + $0xf0] sm:$0xff]
    %v856 = vld [vmem:[#allocation8 + $0xf8] sm:$0xff]
    %v857 = vld [vmem:[%s6] sm:$0x3]
    %v859 = vlaneseq
    %v860 = vshrl.u32 %v859, 7
    %v861 = vsub.s32 0, %v860
    %v862 = vrot.slane %v857, %v861
    %v863 = vlaneseq
    %v864 = vshrl.u32 %v863, 7
    %v865 = vsub.s32 1, %v864
    %v866 = vrot.slane %v857, %v865
    %v901 = vunpack.c.l.b16 %v825
    %v902 = vunpack.c.h.b16 %v825
    %v903 = vunpack.c.l.b16 %v826
    %v904 = vunpack.c.h.b16 %v826
    %v905 = vunpack.c.l.b16 %v827
    %v906 = vunpack.c.h.b16 %v827
    %v907 = vunpack.c.l.b16 %v828
    %v908 = vunpack.c.h.b16 %v828
    %v909 = vunpack.c.l.b16 %v829
    %v910 = vunpack.c.h.b16 %v829
    %v911 = vunpack.c.l.b16 %v830
    %v912 = vunpack.c.h.b16 %v830
    %v913 = vunpack.c.l.b16 %v831
    %v914 = vunpack.c.h.b16 %v831
    %v915 = vunpack.c.l.b16 %v832
    %v916 = vunpack.c.h.b16 %v832
    %v917 = vunpack.c.l.b16 %v833
    %v918 = vunpack.c.h.b16 %v833
    %v919 = vunpack.c.l.b16 %v834
    %v920 = vunpack.c.h.b16 %v834
    %v921 = vunpack.c.l.b16 %v835
    %v922 = vunpack.c.h.b16 %v835
    %v923 = vunpack.c.l.b16 %v836
    %v924 = vunpack.c.h.b16 %v836
    %v925 = vunpack.c.l.b16 %v837
    %v926 = vunpack.c.h.b16 %v837
    %v927 = vunpack.c.l.b16 %v838
    %v928 = vunpack.c.h.b16 %v838
    %v929 = vunpack.c.l.b16 %v839
    %v930 = vunpack.c.h.b16 %v839
    %v931 = vunpack.c.l.b16 %v840
    %v932 = vunpack.c.h.b16 %v840
    %v933 = vunpack.c.l.b16 %v841
    %v934 = vunpack.c.h.b16 %v841
    %v935 = vunpack.c.l.b16 %v842
    %v936 = vunpack.c.h.b16 %v842
    %v937 = vunpack.c.l.b16 %v843
    %v938 = vunpack.c.h.b16 %v843
    %v939 = vunpack.c.l.b16 %v844
    %v940 = vunpack.c.h.b16 %v844
    %v941 = vunpack.c.l.b16 %v845
    %v942 = vunpack.c.h.b16 %v845
    %v943 = vunpack.c.l.b16 %v846
    %v944 = vunpack.c.h.b16 %v846
    %v945 = vunpack.c.l.b16 %v847
    %v946 = vunpack.c.h.b16 %v847
    %v947 = vunpack.c.l.b16 %v848
    %v948 = vunpack.c.h.b16 %v848
    %v949 = vunpack.c.l.b16 %v849
    %v950 = vunpack.c.h.b16 %v849
    %v951 = vunpack.c.l.b16 %v850
    %v952 = vunpack.c.h.b16 %v850
    %v953 = vunpack.c.l.b16 %v851
    %v954 = vunpack.c.h.b16 %v851
    %v955 = vunpack.c.l.b16 %v852
    %v956 = vunpack.c.h.b16 %v852
    %v957 = vunpack.c.l.b16 %v853
    %v958 = vunpack.c.h.b16 %v853
    %v959 = vunpack.c.l.b16 %v854
    %v960 = vunpack.c.h.b16 %v854
    %v961 = vunpack.c.l.b16 %v855
    %v962 = vunpack.c.h.b16 %v855
    %v963 = vunpack.c.l.b16 %v856
    %v964 = vunpack.c.h.b16 %v856
    %v965 = vpack.c.b16 %v903, %v901
    %v966 = vpack.c.b16 %v904, %v902
    %v967 = vpack.c.b16 %v907, %v905
    %v968 = vpack.c.b16 %v908, %v906
    %v969 = vpack.c.b16 %v911, %v909
    %v970 = vpack.c.b16 %v912, %v910
    %v971 = vpack.c.b16 %v915, %v913
    %v972 = vpack.c.b16 %v916, %v914
    %v973 = vpack.c.b16 %v919, %v917
    %v974 = vpack.c.b16 %v920, %v918
    %v975 = vpack.c.b16 %v923, %v921
    %v976 = vpack.c.b16 %v924, %v922
    %v977 = vpack.c.b16 %v927, %v925
    %v978 = vpack.c.b16 %v928, %v926
    %v979 = vpack.c.b16 %v931, %v929
    %v980 = vpack.c.b16 %v932, %v930
    %v981 = vpack.c.b16 %v935, %v933
    %v982 = vpack.c.b16 %v936, %v934
    %v983 = vpack.c.b16 %v939, %v937
    %v984 = vpack.c.b16 %v940, %v938
    %v985 = vpack.c.b16 %v943, %v941
    %v986 = vpack.c.b16 %v944, %v942
    %v987 = vpack.c.b16 %v947, %v945
    %v988 = vpack.c.b16 %v948, %v946
    %v989 = vpack.c.b16 %v951, %v949
    %v990 = vpack.c.b16 %v952, %v950
    %v991 = vpack.c.b16 %v955, %v953
    %v992 = vpack.c.b16 %v956, %v954
    %v993 = vpack.c.b16 %v959, %v957
    %v994 = vpack.c.b16 %v960, %v958
    %v995 = vpack.c.b16 %v963, %v961
    %v996 = vpack.c.b16 %v964, %v962
    %1029 = vmatprep.subr.bf16.mxu0 %v980
    %1030 = vmatpush1.bf16.msra.mxu0 %v979
    %1031 = vmatprep.subr.bf16.mxu0 %v978
    %1032 = vmatpush1.bf16.msra.mxu0 %v977
    %1033 = vmatprep.subr.bf16.mxu0 %v976
    %1034 = vmatpush1.bf16.msra.mxu0 %v975
    %1035 = vmatprep.subr.bf16.mxu0 %v974
    %1036 = vmatpush1.bf16.msra.mxu0 %v973
    %1037 = vmatprep.subr.bf16.mxu0 %v972
    %1038 = vmatpush1.bf16.msra.mxu0 %v971
    %1039 = vmatprep.subr.bf16.mxu0 %v970
    %1040 = vmatpush1.bf16.msra.mxu0 %v969
    %1041 = vmatprep.subr.bf16.mxu0 %v968
    %1042 = vmatpush1.bf16.msra.mxu0 %v967
    %1043 = vmatprep.subr.bf16.mxu0 %v966
    %1044 = vmatpush1.bf16.msra.mxu0 %v965
    %1045 = vmatprep.subr.bf16.mxu0 %v996
    %1046 = vmatpush2.bf16.msra.mxu0 %v995
    %1047 = vmatprep.subr.bf16.mxu0 %v994
    %1048 = vmatpush2.bf16.msra.mxu0 %v993
    %1049 = vmatprep.subr.bf16.mxu0 %v992
    %1050 = vmatpush2.bf16.msra.mxu0 %v991
    %1051 = vmatprep.subr.bf16.mxu0 %v990
    %1052 = vmatpush2.bf16.msra.mxu0 %v989
    %1053 = vmatprep.subr.bf16.mxu0 %v988
    %1054 = vmatpush2.bf16.msra.mxu0 %v987
    %1055 = vmatprep.subr.bf16.mxu0 %v986
    %1056 = vmatpush2.bf16.msra.mxu0 %v985
    %1057 = vmatprep.subr.bf16.mxu0 %v984
    %1058 = vmatpush2.bf16.msra.mxu0 %v983
    %1059 = vmatprep.subr.bf16.mxu0 %v982
    %1060 = vmatpush2.bf16.msra.mxu0 %v981
    %1061 = vmatprep.mubr.bf16.mxu0 %v824
    %1062 = vmatmul.mubr.bf16.gmra.mxu0 %v823
    %v1063 = vpop.f32.mrf.mxu0
    %v1064 = vadd.f32 %v862, %v1063
    %v1065 = vpop.f32.mrf.mxu0
    %v1066 = vadd.f32 %v866, %v1065
    %v1067 = vpop.f32.mrf.mxu0
    %v1068 = vpop.f32.mrf.mxu0
    %1069 = vdwg.mxu0
    %v1070 = vadd.f32 %v1064, %v1066
    %1071 = vadd.xlane.f32.xlu0 %v1070
    %v1072 = vpop.xlane.xlu0 %1071
    %v1073 = vrcp.pop 256.0
    %v1074 = vmul.f32 %v1072, %v1073
    %v1075 = vsub.f32 %v1064, %v1074
    %v1076 = vsub.f32 %v1066, %v1074
    %v1077 = vmul.f32 %v1075, %v1075
    %v1078 = vmul.f32 %v1076, %v1076
    %v1079 = vadd.f32 %v1077, %v1078
    %1080 = vadd.xlane.f32.xlu0 %v1079
    %v1081 = vpop.xlane.xlu0 %1080
    %v1082 = vmul.f32 %v1081, %v1073
    %v1083 = vadd.f32 %v1082, 1e-05
    %v1084 = vrsqrt.pop %v1083
    %v1085 = vmul.f32 %v1075, %v1084
    %v1086 = vmul.f32 %v1076, %v1084
    %v1087 = vld [vmem:[%s7] sm:$0x3]
    %v1089 = vlaneseq
    %v1090 = vshrl.u32 %v1089, 7
    %v1091 = vsub.s32 0, %v1090
    %v1092 = vrot.slane %v1087, %v1091
    %v1093 = vlaneseq
    %v1094 = vshrl.u32 %v1093, 7
    %v1095 = vsub.s32 1, %v1094
    %v1096 = vrot.slane %v1087, %v1095
    %v1099 = vmul.f32 %v1085, %v1092
    %v1100 = vmul.f32 %v1086, %v1096
    %v1101 = vld [vmem:[%s8] sm:$0x3]
    %v1103 = vlaneseq
    %v1104 = vshrl.u32 %v1103, 7
    %v1105 = vsub.s32 0, %v1104
    %v1106 = vrot.slane %v1101, %v1105
    %v1107 = vlaneseq
    %v1108 = vshrl.u32 %v1107, 7
    %v1109 = vsub.s32 1, %v1108
    %v1110 = vrot.slane %v1101, %v1109
    %v1113 = vadd.f32 %v1099, %v1106
    %v1114 = vadd.f32 %v1100, %v1110
    %1115 = vst [vmem:[#allocation10] sm:$0xff] %v1113
    %1116 = vst [vmem:[#allocation10 + $0x8] sm:$0xff] %v1114
    // Predicated region
    $region54: #{tpu_custom_call.1} parent=1 // pred_check
      _
    $region55: #{tpu_custom_call.1} parent=1 // pred_check_branch
      %1118 = sbr.rel (0) target = $region57
    $region56: #{tpu_custom_call.1} parent=1 // pred_region
      %s1120 = ssub.s32 256, 256
      %1121 = vsyncadd [#allocation4], %s1120
      %s1123 = sshll.u32 [#allocation10], 4
      %s1124 = int_to_ptr.vmem [resolvable:$true] %s1123
      %1126 = dma.vmem_to_hbm [thread:$0]  %s1124, 256, %s9, [#allocation4]
    $region57: #{tpu_custom_call.1} parent=1 // pred_fallthru
      _
    // Predicated region
    $region58: #{tpu_custom_call.1} parent=1 // pred_check
      _
    $region59: #{tpu_custom_call.1} parent=1 // pred_check_branch
      %1128 = sbr.rel (0) target = $region61
    $region60: #{tpu_custom_call.1} parent=1 // pred_region
      %1129 = dma.done [#allocation4], 256
    $region61: #{tpu_custom_call.1} parent=1 // pred_fallthru
      _
    %1130 = vsyncpa [#allocation3], 1
    %1131 = vsyncpa [#allocation6], 1
    %1132 = vsyncpa [#allocation9], 1
    %1133 = vsyncpa [#allocation4], 1

</llo_original>
